<compile_context>
chip_gen: v6e
topology: v6e:2x2x1
jax: 0.10.0
libtpu: 0.0.40
codegen_flags: <defaults>
</compile_context>

<pallas_src>
import math
import functools

import jax
import jax.numpy as jnp
from jax.experimental import pallas as pl
from jax.experimental.pallas import tpu as pltpu


def _round_up(x, m):
    return (x + m - 1) // m * m


def _arcface_kernel(emb_ref, inv_en_ref, w_ref, lab_ref, out_ref, origin_ref,
                    inv_wn_ref, *, scale, cos_m, sin_m, th, mm, easy_margin,
                    tn, cache_wnorm, eps):
    j = pl.program_id(0)   # C-tile index (outer)
    i = pl.program_id(1)   # B-tile index (inner)

    def _col_inv_norm():
        w = w_ref[...]                                           # (D, tn)
        return jax.lax.rsqrt(jnp.sum(w * w, axis=0, keepdims=True) + eps)

    if cache_wnorm:
        # Inner B axis is sequential per C tile: fill the tiny cache at i==0.
        @pl.when(i == 0)
        def _():
            inv_wn_ref[...] = _col_inv_norm()
        inv_wn = inv_wn_ref[...]                                 # (1, tn)
    else:
        inv_wn = _col_inv_norm()

    # Row normalization: inv_en precomputed once per batch in the wrapper.
    emb_n = emb_ref[...] * inv_en_ref[...]                       # (tm, D)

    # cos_theta = emb_n @ W on the MXU; the per-column 1/||w|| scale is applied
    # post-matmul (equivalent to normalizing W's columns beforehand).
    cos_theta = jnp.dot(emb_n, w_ref[...],
                        preferred_element_type=jnp.float32) * inv_wn
    cos_theta = jnp.clip(cos_theta, -1.0, 1.0)                   # (tm, tn)

    origin_scaled = cos_theta * scale
    origin_ref[...] = origin_scaled

    # One-hot gather/scatter restricted to this C tile.  Shift the labels by
    # -j*tn (a (tm,1) int op) so the (tm,tn) iota is j-independent.
    local_labels = lab_ref[...] - j * tn                         # (tm, 1) int32
    col_ids = jax.lax.broadcasted_iota(jnp.int32, cos_theta.shape, 1)
    onehot = col_ids == local_labels                             # (tm, tn) bool

    # target is nonzero only in the tile owning the label column; elsewhere
    # onehot is all-false and the final select is a no-op.
    target = jnp.sum(jnp.where(onehot, cos_theta, 0.0),
                     axis=1, keepdims=True)                      # (tm, 1)
    sin_t = jnp.sqrt(jnp.maximum(1.0 - target * target, 0.0))
    cos_t_m = target * cos_m - sin_t * sin_m
    if easy_margin:
        final = jnp.where(target > 0.0, cos_t_m, target)
    else:
        final = jnp.where(target > th, cos_t_m, target - mm)

    out_ref[...] = jnp.where(onehot, final * scale, origin_scaled)


def arcface_forward(embeddings, weight, labels, *, scale=64.0, margin=0.5,
                    easy_margin=False, block_b=None, block_c=None):
    """embeddings: (B, D) f32, weight: (D, C) f32, labels: (B,) int32.

    Returns (output, origin_cos) = (margin logits * scale, cos * scale).
    """
    B, D = embeddings.shape
    D2, C = weight.shape
    assert D == D2

    cos_m = math.cos(margin)
    sin_m = math.sin(margin)
    th = math.cos(math.pi - margin)
    mm = math.sin(math.pi - margin) * margin
    eps = 1e-12

    embeddings = embeddings.astype(jnp.float32)
    weight = weight.astype(jnp.float32)
    labels_2d = labels.reshape(B, 1).astype(jnp.int32)

    # Hoisted once-per-batch row-norm (the kernel re-streams emb n_c times).
    inv_en = jax.lax.rsqrt(
        jnp.sum(embeddings * embeddings, axis=1, keepdims=True) + eps)

    # --- tile sizes: lane-dense multiples of (8, 128), shrunk to a VMEM budget ---
    tm = block_b if block_b is not None else min(256, _round_up(B, 8))
    tn = block_c if block_c is not None else min(1024, _round_up(C, 128))
    tm = _round_up(tm, 8)
    tn = _round_up(tn, 128)

    def _vmem_bytes(tm_, tn_):
        # emb + inv_en + labels double-buffered, W double-buffered,
        # two outputs double-buffered, (1, tn) scratch.
        return 4 * (2 * tm_ * (D + 2) + 2 * D * tn_ + 4 * tm_ * tn_ + tn_)

    VMEM_BUDGET = 28 * 1024 * 1024
    while _vmem_bytes(tm, tn) > VMEM_BUDGET:
        if tn > 128:
            tn //= 2
        elif tm > 8:
            tm //= 2
        else:
            break

    Bp = _round_up(B, tm)
    Cp = _round_up(C, tn)
    if Bp != B:
        embeddings = jnp.pad(embeddings, ((0, Bp - B), (0, 0)))
        inv_en = jnp.pad(inv_en, ((0, Bp - B), (0, 0)), constant_values=1.0)
        labels_2d = jnp.pad(labels_2d, ((0, Bp - B), (0, 0)))
    if Cp != C:
        weight = jnp.pad(weight, ((0, 0), (0, Cp - C)), constant_values=1.0)

    n_b = Bp // tm
    n_c = Cp // tn

    if n_c >= 2:
        # Shard C tiles across TensorCores; B axis sequential so the i==0
        # column-norm cache is valid per C tile.
        dim_sem = ("parallel", "arbitrary")
        cache_wnorm = n_b > 1
    else:
        # Single C tile: let megacore split the batch axis instead (v7x).
        # The inner axis may be sharded, so recompute the (1, tn) norms per step.
        dim_sem = ("arbitrary", "parallel")
        cache_wnorm = False

    kernel = functools.partial(
        _arcface_kernel,
        scale=float(scale), cos_m=cos_m, sin_m=sin_m, th=th, mm=mm,
        easy_margin=easy_margin, tn=tn, cache_wnorm=cache_wnorm, eps=eps,
    )

    cost = pl.CostEstimate(
        flops=2 * Bp * D * Cp,
        transcendentals=Bp + Cp,
        # emb/inv_en/labels re-streamed n_c times, W streamed once, 2 outputs.
        bytes_accessed=4 * (n_c * Bp * (D + 2) + D * Cp + 2 * Bp * Cp),
    )

    grid_spec = pltpu.PrefetchScalarGridSpec(
        num_scalar_prefetch=0,
        grid=(n_c, n_b),          # C tiles outer, B tiles inner (W resident per j)
        in_specs=[
            pl.BlockSpec((tm, D), lambda j, i: (i, 0)),   # embeddings
            pl.BlockSpec((tm, 1), lambda j, i: (i, 0)),   # inv row norms
            pl.BlockSpec((D, tn), lambda j, i: (0, j)),   # W (same block across i)
            pl.BlockSpec((tm, 1), lambda j, i: (i, 0)),   # labels
        ],
        out_specs=(
            pl.BlockSpec((tm, tn), lambda j, i: (i, j)),  # margin logits * scale
            pl.BlockSpec((tm, tn), lambda j, i: (i, j)),  # origin cos * scale
        ),
        scratch_shapes=[pltpu.VMEM((1, tn), jnp.float32)],  # inv column norms
    )

    out, origin = pl.pallas_call(
        kernel,
        out_shape=(
            jax.ShapeDtypeStruct((Bp, Cp), jnp.float32),
            jax.ShapeDtypeStruct((Bp, Cp), jnp.float32),
        ),
        grid_spec=grid_spec,
        compiler_params=pltpu.CompilerParams(
            dimension_semantics=dim_sem,
            vmem_limit_bytes=48 * 1024 * 1024,
        ),
        cost_estimate=cost,
    )(embeddings, inv_en, weight, labels_2d)

    if Bp != B or Cp != C:
        out = out[:B, :C]
        origin = origin[:B, :C]
    return out, origin


def _reference(embeddings, weight, labels, *, scale, margin, easy_margin):
    B = embeddings.shape[0]
    emb_n = embeddings / jnp.linalg.norm(embeddings, axis=1, keepdims=True)
    w_n = weight / jnp.linalg.norm(weight, axis=0, keepdims=True)
    cos = jnp.clip(emb_n @ w_n, -1.0, 1.0)
    tgt = cos[jnp.arange(B), labels][:, None]
    sin = jnp.sqrt(1.0 - tgt * tgt)
    ctm = tgt * math.cos(margin) - sin * math.sin(margin)
    if easy_margin:
        fin = jnp.where(tgt > 0.0, ctm, tgt)
    else:
        fin = jnp.where(tgt > math.cos(math.pi - margin), ctm,
                        tgt - math.sin(math.pi - margin) * margin)
    ref = cos.at[jnp.arange(B), labels].set(fin[:, 0]) * scale
    return ref, cos * scale


if __name__ == "__main__":
    key = jax.random.PRNGKey(0)

    # Test 1: small shapes consistent with the module (single tile).
    B, D, C = 8, 32, 128
    k_emb, k_w, k_lab, key = jax.random.split(key, 4)
    embeddings = jax.random.normal(k_emb, (B, D), dtype=jnp.float32)
    weight = 0.01 * jax.random.normal(k_w, (D, C), dtype=jnp.float32)  # std=0.01 init
    labels = jax.random.randint(k_lab, (B,), 0, C, dtype=jnp.int32)

    out, origin = arcface_forward(embeddings, weight, labels,
                                  scale=64.0, margin=0.5, easy_margin=False)
    jax.block_until_ready((out, origin))
    ref, ref_origin = _reference(embeddings, weight, labels,
                                 scale=64.0, margin=0.5, easy_margin=False)
    assert jnp.allclose(out, ref, atol=1e-4, rtol=1e-4)
    assert jnp.allclose(origin, ref_origin, atol=1e-4, rtol=1e-4)

    # Test 2: multi-tile grid (exercises the i==0 column-norm cache and the
    # "parallel" C axis) with forced small blocks.
    B2, D2, C2 = 16, 32, 256
    k_emb, k_w, k_lab, key = jax.random.split(key, 4)
    emb2 = jax.random.normal(k_emb, (B2, D2), dtype=jnp.float32)
    w2 = 0.01 * jax.random.normal(k_w, (D2, C2), dtype=jnp.float32)
    lab2 = jax.random.randint(k_lab, (B2,), 0, C2, dtype=jnp.int32)

    out2, origin2 = arcface_forward(emb2, w2, lab2, scale=64.0, margin=0.5,
                                    easy_margin=False, block_b=8, block_c=128)
    jax.block_until_ready((out2, origin2))
    ref2, ref_origin2 = _reference(emb2, w2, lab2,
                                   scale=64.0, margin=0.5, easy_margin=False)
    assert jnp.allclose(out2, ref2, atol=1e-4, rtol=1e-4)
    assert jnp.allclose(origin2, ref_origin2, atol=1e-4, rtol=1e-4)

    print("KERNEL_OK")
</pallas_src>

<mosaic_0001>
module attributes {stable_mosaic.version = 11 : i64} {
  func.func @_arcface_kernel(%arg0: i32, %arg1: i32, %arg2: memref<8x32xf32, #tpu.memory_space<vmem>>, %arg3: memref<8x1xf32, #tpu.memory_space<vmem>>, %arg4: memref<32x128xf32, #tpu.memory_space<vmem>>, %arg5: memref<8x1xi32, #tpu.memory_space<vmem>>, %arg6: memref<8x128xf32, #tpu.memory_space<vmem>>, %arg7: memref<8x128xf32, #tpu.memory_space<vmem>>, %arg8: memref<1x128xf32, #tpu.memory_space<vmem>>) attributes {dimension_semantics = [#tpu.dimension_semantics<arbitrary>, #tpu.dimension_semantics<parallel>], iteration_bounds = array<i64: 1, 1>, scalar_prefetch = 0 : i64, scratch_operands = 1 : i64, tpu.core_type = #tpu.core_type<tc>, window_params = [{transform_indices = @transform_0, window_bounds = array<i64: 8, 32>}, {transform_indices = @transform_1, window_bounds = array<i64: 8, 1>}, {transform_indices = @transform_2, window_bounds = array<i64: 32, 128>}, {transform_indices = @transform_3, window_bounds = array<i64: 8, 1>}, {transform_indices = @transform_4, window_bounds = array<i64: 8, 128>}, {transform_indices = @transform_5, window_bounds = array<i64: 8, 128>}]} {
    %c0 = arith.constant 0 : index
    %c0_0 = arith.constant 0 : index
    %0 = vector.load %arg4[%c0, %c0_0] : memref<32x128xf32, #tpu.memory_space<vmem>>, vector<32x128xf32>
    %1 = arith.mulf %0, %0 : vector<32x128xf32>
    %cst = arith.constant dense<0.000000e+00> : vector<128xf32>
    %2 = vector.multi_reduction <add>, %1, %cst [0] : vector<32x128xf32> to vector<128xf32>
    %3 = vector.shape_cast %2 : vector<128xf32> to vector<1x128xf32>
    %cst_1 = arith.constant 9.99999996E-13 : f32
    %4 = vector.broadcast %cst_1 : f32 to vector<1x128xf32>
    %5 = arith.addf %3, %4 : vector<1x128xf32>
    %6 = math.rsqrt %5 : vector<1x128xf32>
    %c0_2 = arith.constant 0 : index
    %c0_3 = arith.constant 0 : index
    %7 = vector.load %arg2[%c0_2, %c0_3] : memref<8x32xf32, #tpu.memory_space<vmem>>, vector<8x32xf32>
    %c0_4 = arith.constant 0 : index
    %c0_5 = arith.constant 0 : index
    %8 = vector.load %arg3[%c0_4, %c0_5] : memref<8x1xf32, #tpu.memory_space<vmem>>, vector<8x1xf32>
    %9 = vector.broadcast %8 : vector<8x1xf32> to vector<8x32xf32>
    %10 = arith.mulf %7, %9 : vector<8x32xf32>
    %c0_6 = arith.constant 0 : index
    %c0_7 = arith.constant 0 : index
    %11 = vector.load %arg4[%c0_6, %c0_7] : memref<32x128xf32, #tpu.memory_space<vmem>>, vector<32x128xf32>
    %cst_8 = arith.constant dense<0.000000e+00> : vector<8x128xf32>
    %12 = tpu.matmul %10, %11, %cst_8 {dimension_numbers = #tpu.dot_dimension_numbers<[1], [0], [0], [1], [0, 0, 1, 1], [], []>} : vector<8x32xf32>, vector<32x128xf32>, vector<8x128xf32> -> vector<8x128xf32>
    %13 = vector.broadcast %6 : vector<1x128xf32> to vector<8x128xf32>
    %14 = arith.mulf %12, %13 : vector<8x128xf32>
    %cst_9 = arith.constant -1.000000e+00 : f32
    %cst_10 = arith.constant 1.000000e+00 : f32
    %15 = vector.broadcast %cst_9 : f32 to vector<8x128xf32>
    %16 = arith.maximumf %15, %14 : vector<8x128xf32>
    %17 = vector.broadcast %cst_10 : f32 to vector<8x128xf32>
    %18 = arith.minimumf %17, %16 : vector<8x128xf32>
    %cst_11 = arith.constant 6.400000e+01 : f32
    %19 = vector.broadcast %cst_11 : f32 to vector<8x128xf32>
    %20 = arith.mulf %18, %19 : vector<8x128xf32>
    %c0_12 = arith.constant 0 : index
    %c0_13 = arith.constant 0 : index
    %21 = vector.load %arg7[%c0_12, %c0_13] : memref<8x128xf32, #tpu.memory_space<vmem>>, vector<8x128xf32>
    tpu.vector_store %arg7[%c0_12, %c0_13], %20 {strides = array<i32>} : memref<8x128xf32, #tpu.memory_space<vmem>>, vector<8x128xf32>,
    %c0_14 = arith.constant 0 : index
    %c0_15 = arith.constant 0 : index
    %22 = vector.load %arg5[%c0_14, %c0_15] : memref<8x1xi32, #tpu.memory_space<vmem>>, vector<8x1xi32>
    %c128_i32 = arith.constant 128 : i32
    %23 = arith.muli %arg0, %c128_i32 : i32
    %24 = vector.broadcast %23 : i32 to vector<8x1xi32>
    %25 = arith.subi %22, %24 : vector<8x1xi32>
    %26 = tpu.iota {dimensions = array<i32: 1>} : vector<8x128xi32>
    %27 = vector.broadcast %25 : vector<8x1xi32> to vector<8x128xi32>
    %28 = arith.cmpi eq, %26, %27 : vector<8x128xi32>
    %cst_16 = arith.constant 0.000000e+00 : f32
    %29 = vector.broadcast %cst_16 : f32 to vector<8x128xf32>
    %30 = arith.select %28, %18, %29 : vector<8x128xi1>, vector<8x128xf32>
    %cst_17 = arith.constant dense<0.000000e+00> : vector<8xf32>
    %31 = vector.multi_reduction <add>, %30, %cst_17 [1] : vector<8x128xf32> to vector<8xf32>
    %32 = vector.shape_cast %31 : vector<8xf32> to vector<8x1xf32>
    %33 = arith.mulf %32, %32 : vector<8x1xf32>
    %cst_18 = arith.constant 1.000000e+00 : f32
    %34 = vector.broadcast %cst_18 : f32 to vector<8x1xf32>
    %35 = arith.subf %34, %33 : vector<8x1xf32>
    %cst_19 = arith.constant 0.000000e+00 : f32
    %36 = vector.broadcast %cst_19 : f32 to vector<8x1xf32>
    %37 = arith.maximumf %35, %36 : vector<8x1xf32>
    %38 = math.sqrt %37 : vector<8x1xf32>
    %cst_20 = arith.constant 0.87758255 : f32
    %39 = vector.broadcast %cst_20 : f32 to vector<8x1xf32>
    %40 = arith.mulf %32, %39 : vector<8x1xf32>
    %cst_21 = arith.constant 0.47942555 : f32
    %41 = vector.broadcast %cst_21 : f32 to vector<8x1xf32>
    %42 = arith.mulf %38, %41 : vector<8x1xf32>
    %43 = arith.subf %40, %42 : vector<8x1xf32>
    %cst_22 = arith.constant -0.87758255 : f32
    %44 = vector.broadcast %cst_22 : f32 to vector<8x1xf32>
    %45 = arith.cmpf ogt, %32, %44 : vector<8x1xf32>
    %cst_23 = arith.constant 0.239712775 : f32
    %46 = vector.broadcast %cst_23 : f32 to vector<8x1xf32>
    %47 = arith.subf %32, %46 : vector<8x1xf32>
    %48 = arith.select %45, %43, %47 : vector<8x1xi1>, vector<8x1xf32>
    %cst_24 = arith.constant 6.400000e+01 : f32
    %49 = vector.broadcast %cst_24 : f32 to vector<8x1xf32>
    %50 = arith.mulf %48, %49 : vector<8x1xf32>
    %51 = vector.shape_cast %50 : vector<8x1xf32> to vector<8x1xf32>
    %52 = vector.broadcast %51 : vector<8x1xf32> to vector<8x128xf32>
    %53 = arith.select %28, %52, %20 : vector<8x128xi1>, vector<8x128xf32>
    %c0_25 = arith.constant 0 : index
    %c0_26 = arith.constant 0 : index
    %54 = vector.load %arg6[%c0_25, %c0_26] : memref<8x128xf32, #tpu.memory_space<vmem>>, vector<8x128xf32>
    tpu.vector_store %arg6[%c0_25, %c0_26], %53 {strides = array<i32>} : memref<8x128xf32, #tpu.memory_space<vmem>>, vector<8x128xf32>,
    return
  }
  func.func @transform_0(%arg0: i32, %arg1: i32) -> (i32, i32) {
    %c0_i32 = arith.constant 0 : i32
    %c0_i32_0 = arith.constant 0 : i32
    return %arg1, %c0_i32 : i32, i32
  }
  func.func @transform_1(%arg0: i32, %arg1: i32) -> (i32, i32) {
    %c0_i32 = arith.constant 0 : i32
    %c0_i32_0 = arith.constant 0 : i32
    return %arg1, %c0_i32 : i32, i32
  }
  func.func @transform_2(%arg0: i32, %arg1: i32) -> (i32, i32) {
    %c0_i32 = arith.constant 0 : i32
    %c0_i32_0 = arith.constant 0 : i32
    return %c0_i32, %arg0 : i32, i32
  }
  func.func @transform_3(%arg0: i32, %arg1: i32) -> (i32, i32) {
    %c0_i32 = arith.constant 0 : i32
    %c0_i32_0 = arith.constant 0 : i32
    return %arg1, %c0_i32 : i32, i32
  }
  func.func @transform_4(%arg0: i32, %arg1: i32) -> (i32, i32) {
    %c0_i32 = arith.constant 0 : i32
    return %arg1, %arg0 : i32, i32
  }
  func.func @transform_5(%arg0: i32, %arg1: i32) -> (i32, i32) {
    %c0_i32 = arith.constant 0 : i32
    return %arg1, %arg0 : i32, i32
  }
}

</mosaic_0001>

<llo_original>
// kernel: tpu_custom_call.1
$region0: #{tpu_custom_call.1}
  #allocation0 [shape = 'u32[]', space=smem, size = 0x4, offset = 0x4, fixed_abs, tag = 'smem constant byte address 0x4 - core index']
  #allocation1 [shape = 'u32[144,128]{1,0:T(1,128)}', space=vmem, size = 0x12000, scoped, tag = 'internal scratch']
  #allocation2 [shape = 'f32[1,128]{1,0:T(1,128)}', space=vmem, size = 0x200, scoped, tag = 'scratch operand']
  %s0 = inlined_call_operand.vmem [shape: f32[8,32], index: 0, kind: input, shape index: {}]
  %s1 = inlined_call_operand.vmem [shape: f32[8,1], index: 1, kind: input, shape index: {}]
  %s2 = inlined_call_operand.hbm [shape: f32[32,128], index: 2, kind: input, shape index: {}]
  %s3 = inlined_call_operand.vmem [shape: s32[8,1], index: 3, kind: input, shape index: {}]
  %s4 = inlined_call_operand.hbm [shape: f32[8,128], index: 4, kind: output, shape index: {0}]
  %s5 = inlined_call_operand.hbm [shape: f32[8,128], index: 5, kind: output, shape index: {1}]
  %6 = xla_tuple %s4, %s5
  %s7 = sld [smem:[#allocation0]]
  $region38: #{tpu_custom_call.1} parent=0
    _
  %s9 = ssub.s32 1, %s7
  %s10 = scalar_select 0, %s9, %s7
  $region1: #{tpu_custom_call.1} parent=0
    #allocation3 [shape = 'u8[16384]{0}', space=vmem, size = 0x4000, scoped, tag = 'input window, operand 2, single buffered']
    #allocation4 [shape = 's32[1]{0}', space=sflag, size = 0x4, scoped, tag = 'scoped memory for tpu_custom_call.1']
    #allocation5 [shape = 's32[1]{0}', space=sflag, size = 0x4, scoped, tag = 'scoped memory for tpu_custom_call.1']
    #allocation6 [shape = 'u8[4096]{0}', space=vmem, size = 0x1000, scoped, tag = 'output window, operand 0, single buffered']
    #allocation7 [shape = 'u8[4096]{0}', space=vmem, size = 0x1000, scoped, tag = 'output window, operand 1, single buffered']
    #allocation8 [shape = 's32[1]{0}', space=sflag, size = 0x4, scoped, tag = 'scoped memory for tpu_custom_call.1']
    %11 = vsyncpa [#allocation4], 0
    %12 = vsyncpa [#allocation5], 0
    %13 = vsyncpa [#allocation8], 0
    // Predicated region
    $region2: #{tpu_custom_call.1} parent=1 // pred_check
      _
    $region3: #{tpu_custom_call.1} parent=1 // pred_check_branch
      %15 = sbr.rel (0) target = $region5
    $region4: #{tpu_custom_call.1} parent=1 // pred_region
      _
    $region5: #{tpu_custom_call.1} parent=1 // pred_fallthru
      _
    // Predicated region
    $region6: #{tpu_custom_call.1} parent=1 // pred_check
      _
    $region7: #{tpu_custom_call.1} parent=1 // pred_check_branch
      %17 = sbr.rel (0) target = $region9
    $region8: #{tpu_custom_call.1} parent=1 // pred_region
      _
    $region9: #{tpu_custom_call.1} parent=1 // pred_fallthru
      _
    // Predicated region
    $region10: #{tpu_custom_call.1} parent=1 // pred_check
      _
    $region11: #{tpu_custom_call.1} parent=1 // pred_check_branch
      %19 = sbr.rel (0) target = $region13
    $region12: #{tpu_custom_call.1} parent=1 // pred_region
      %s21 = ssub.s32 512, 512
      %22 = vsyncadd [#allocation4], %s21
      %s23 = sshll.u32 [#allocation3], 4
      %s24 = int_to_ptr.vmem [resolvable:$true] %s23
      %29 = dma.hbm_to_vmem [thread:$0]  %s2, 512, %s24, [#allocation4], 128, 128, 8
    $region13: #{tpu_custom_call.1} parent=1 // pred_fallthru
      _
    // Predicated region
    $region14: #{tpu_custom_call.1} parent=1 // pred_check
      _
    $region15: #{tpu_custom_call.1} parent=1 // pred_check_branch
      %31 = sbr.rel (0) target = $region17
    $region16: #{tpu_custom_call.1} parent=1 // pred_region
      _
    $region17: #{tpu_custom_call.1} parent=1 // pred_fallthru
      _
    // Predicated region
    $region18: #{tpu_custom_call.1} parent=1 // pred_check
      _
    $region19: #{tpu_custom_call.1} parent=1 // pred_check_branch
      %33 = sbr.rel (0) target = $region21
    $region20: #{tpu_custom_call.1} parent=1 // pred_region
      %34 = dma.done [#allocation4], 512
    $region21: #{tpu_custom_call.1} parent=1 // pred_fallthru
      _
    %v35 = vld [vmem:[#allocation3] sm:$0xff]
    %v36 = vld [vmem:[#allocation3 + $0x8] sm:$0xff]
    %v37 = vld [vmem:[#allocation3 + $0x10] sm:$0xff]
    %v38 = vld [vmem:[#allocation3 + $0x18] sm:$0xff]
    %v39 = vmul.f32 %v35, %v35
    %v40 = vmul.f32 %v36, %v36
    %v41 = vmul.f32 %v37, %v37
    %v42 = vmul.f32 %v38, %v38
    %v43 = vadd.f32 %v39, %v40
    %v44 = vadd.f32 %v43, %v41
    %v45 = vadd.f32 %v44, %v42
    %v46 = vrot.slane %v45, 4
    %v47 = vadd.f32 %v45, %v46
    %v48 = vrot.slane %v47, 2
    %v49 = vadd.f32 %v47, %v48
    %v50 = vrot.slane %v49, 1
    %v51 = vadd.f32 %v49, %v50
    %v52 = vadd.f32 %v51, 1e-12
    %v53 = vrsqrt.pop %v52
    %v54 = vld [vmem:[%s0] sm:$0xff]
    %v55 = vld [vmem:[%s1] sm:$0xff]
    %57 = vset.pattern.permute.xlu0 0
    %58 = vperm.xlu0 %57, %v55
    %v59 = vpop.permute.xlu0 %58
    %v61 = vmul.f32 %v54, %v59
    %vm62 = vcmask 261120
    %v64 = vsel %vm62, %v61, 0
    %66 = vmatprep.subr.mxu0 0.0
    %67 = vmatpush1.msra.mxu0 0.0
    %68 = vmatprep.subr.mxu0 0.0
    %69 = vmatpush1.msra.mxu0 0.0
    %70 = vmatprep.subr.mxu0 0.0
    %71 = vmatpush1.msra.mxu0 0.0
    %72 = vmatprep.subr.mxu0 0.0
    %73 = vmatpush1.msra.mxu0 0.0
    %74 = vmatprep.subr.mxu0 0.0
    %75 = vmatpush1.msra.mxu0 0.0
    %76 = vmatprep.subr.mxu0 0.0
    %77 = vmatpush1.msra.mxu0 0.0
    %78 = vmatprep.subr.mxu0 0.0
    %79 = vmatpush1.msra.mxu0 0.0
    %80 = vmatprep.subr.mxu0 0.0
    %81 = vmatpush1.msra.mxu0 0.0
    %82 = vmatprep.subr.mxu0 0.0
    %83 = vmatpush1.msra.mxu0 0.0
    %84 = vmatprep.subr.mxu0 0.0
    %85 = vmatpush1.msra.mxu0 0.0
    %86 = vmatprep.subr.mxu0 0.0
    %87 = vmatpush1.msra.mxu0 0.0
    %88 = vmatprep.subr.mxu0 0.0
    %89 = vmatpush1.msra.mxu0 0.0
    %90 = vmatprep.subr.mxu0 0.0
    %91 = vmatpush1.msra.mxu0 %v38
    %92 = vmatprep.subr.mxu0 0.0
    %93 = vmatpush1.msra.mxu0 %v37
    %94 = vmatprep.subr.mxu0 0.0
    %95 = vmatpush1.msra.mxu0 %v36
    %96 = vmatprep.subr.mxu0 0.0
    %97 = vmatpush1.msra.mxu0 %v35
    %98 = vmatprep.subr.mxu0 0.0
    %99 = vmatpush2.msra.mxu0 0.0
    %100 = vmatprep.subr.mxu0 0.0
    %101 = vmatpush2.msra.mxu0 0.0
    %102 = vmatprep.subr.mxu0 0.0
    %103 = vmatpush2.msra.mxu0 0.0
    %104 = vmatprep.subr.mxu0 0.0
    %105 = vmatpush2.msra.mxu0 0.0
    %106 = vmatprep.subr.mxu0 0.0
    %107 = vmatpush2.msra.mxu0 0.0
    %108 = vmatprep.subr.mxu0 0.0
    %109 = vmatpush2.msra.mxu0 0.0
    %110 = vmatprep.subr.mxu0 0.0
    %111 = vmatpush2.msra.mxu0 0.0
    %112 = vmatprep.subr.mxu0 0.0
    %113 = vmatpush2.msra.mxu0 0.0
    %114 = vmatprep.subr.mxu0 0.0
    %115 = vmatpush2.msra.mxu0 0.0
    %116 = vmatprep.subr.mxu0 0.0
    %117 = vmatpush2.msra.mxu0 0.0
    %118 = vmatprep.subr.mxu0 0.0
    %119 = vmatpush2.msra.mxu0 0.0
    %120 = vmatprep.subr.mxu0 0.0
    %121 = vmatpush2.msra.mxu0 0.0
    %122 = vmatprep.subr.mxu0 0.0
    %123 = vmatpush2.msra.mxu0 0.0
    %124 = vmatprep.subr.mxu0 0.0
    %125 = vmatpush2.msra.mxu0 0.0
    %126 = vmatprep.subr.mxu0 0.0
    %127 = vmatpush2.msra.mxu0 0.0
    %128 = vmatprep.subr.mxu0 0.0
    %129 = vmatpush2.msra.mxu0 0.0
    %130 = vmatprep.mubr.f32.mxu0 0.0
    %131 = vmatmul.mubr.f32.gmra.mxu0 %v64
    %v132 = vpop.f32.mrf.mxu0
    %v133 = vadd.f32 0.0, %v132
    %v134 = vpop.f32.mrf.mxu0
    %135 = vdwg.mxu0
    %v136 = vmul.f32 %v133, %v53
    %v137 = vmax.f32 %v136, -1.0
    %v138 = vmin.f32 %v137, 1.0
    %v139 = vmul.f32 %v138, 64.0
    %140 = vst [vmem:[#allocation7] sm:$0xff] %v139
    %v141 = vld [vmem:[%s3] sm:$0xff]
    %s142 = smul.u32 0, 128
    %v143 = vstv %s142
    %v144 = vsub.s32 %v141, %v143
    %v145 = vlaneseq
    %v146 = vand.u32 %v145, 127
    %147 = vset.pattern.permute.xlu0 0
    %148 = vperm.xlu0 %147, %v144
    %v149 = vpop.permute.xlu0 %148
    %vm150 = vcmp.eq.s32.totalorder %v146, %v149
    %v151 = vsel %vm150, %v138, 0.0
    %152 = vadd.xlane.f32.xlu0 %v151
    %v153 = vpop.xlane.xlu0 %152
    %v154 = vmul.f32 %v153, %v153
    %v155 = vsub.f32 1.0, %v154
    %v156 = vmax.f32 %v155, 0.0
    %v157 = vrsqrt.pop %v156
    %v158 = vmul.f32 %v156, %v157
    %vm159 = vcmp.eq.f32.partialorder %v156, inf
    %v160 = vsel %vm159, %v156, %v158
    %vm161 = vcmp.eq.f32.partialorder %v156, 0.0
    %v162 = vand.u32 %v156, 2147483648
    %v163 = vsel %vm161, %v162, %v160
    %v164 = vmul.f32 %v153, 0.87758255
    %v165 = vmul.f32 %v163, 0.47942555
    %v166 = vsub.f32 %v164, %v165
    %vm167 = vcmp.gt.f32.partialorder %v153, -0.87758255
    %v168 = vsub.f32 %v153, 0.23971277
    %v169 = vsel %vm167, %v166, %v168
    %v170 = vmul.f32 %v169, 64.0
    %v171 = vsel %vm150, %v170, %v139
    %172 = vst [vmem:[#allocation6] sm:$0xff] %v171
    // Predicated region
    $region22: #{tpu_custom_call.1} parent=1 // pred_check
      _
    $region23: #{tpu_custom_call.1} parent=1 // pred_check_branch
      %174 = sbr.rel (0) target = $region25
    $region24: #{tpu_custom_call.1} parent=1 // pred_region
      %s176 = ssub.s32 128, 128
      %177 = vsyncadd [#allocation5], %s176
      %s179 = sshll.u32 [#allocation6], 4
      %s180 = int_to_ptr.vmem [resolvable:$true] %s179
      %182 = dma.vmem_to_hbm [thread:$0]  %s180, 128, %s4, [#allocation5]
    $region25: #{tpu_custom_call.1} parent=1 // pred_fallthru
      _
    // Predicated region
    $region26: #{tpu_custom_call.1} parent=1 // pred_check
      _
    $region27: #{tpu_custom_call.1} parent=1 // pred_check_branch
      %184 = sbr.rel (0) target = $region29
    $region28: #{tpu_custom_call.1} parent=1 // pred_region
      %s186 = ssub.s32 128, 128
      %187 = vsyncadd [#allocation8], %s186
      %s189 = sshll.u32 [#allocation7], 4
      %s190 = int_to_ptr.vmem [resolvable:$true] %s189
      %192 = dma.vmem_to_hbm [thread:$0]  %s190, 128, %s5, [#allocation8]
    $region29: #{tpu_custom_call.1} parent=1 // pred_fallthru
      _
    // Predicated region
    $region30: #{tpu_custom_call.1} parent=1 // pred_check
      _
    $region31: #{tpu_custom_call.1} parent=1 // pred_check_branch
      %194 = sbr.rel (0) target = $region33
    $region32: #{tpu_custom_call.1} parent=1 // pred_region
      %195 = dma.done [#allocation5], 128
    $region33: #{tpu_custom_call.1} parent=1 // pred_fallthru
      _
    // Predicated region
    $region34: #{tpu_custom_call.1} parent=1 // pred_check
      _
    $region35: #{tpu_custom_call.1} parent=1 // pred_check_branch
      %197 = sbr.rel (0) target = $region37
    $region36: #{tpu_custom_call.1} parent=1 // pred_region
      %198 = dma.done [#allocation8], 128
    $region37: #{tpu_custom_call.1} parent=1 // pred_fallthru
      _
    %199 = vsyncpa [#allocation4], 1
    %200 = vsyncpa [#allocation5], 1
    %201 = vsyncpa [#allocation8], 1

</llo_original>
